<compile_context>
chip_gen: v7x
topology: tpu7x:2x2x1
jax: 0.10.0
libtpu: 0.0.40
codegen_flags: <defaults>
</compile_context>

<pallas_src>
import functools

import jax
import jax.numpy as jnp
from jax.experimental import pallas as pl
from jax.experimental.pallas import tpu as pltpu


EPS = 1e-6


def _round_up(a, m):
    return ((a + m - 1) // m) * m


def _const_block_spec(shape):
    """BlockSpec for a grid-invariant operand; single-buffered when supported."""
    idx = lambda i: (0,) * len(shape)
    if hasattr(pl, "Buffered"):
        try:
            return pl.BlockSpec(shape, idx, pipeline_mode=pl.Buffered(1))
        except TypeError:
            pass  # older BlockSpec without pipeline_mode: fall back to default
    return pl.BlockSpec(shape, idx)


def sublayer_connection_kernel(x_ref, w_ref, b_ref, o_ref, *, d_real, approx_recip):
    # x_ref: (TM, D) f32 tile of flattened (B*S) rows.
    x = x_ref[...]

    # ----- LayerNorm stats: unbiased std (torch.std, ddof=1), centered form -----
    mean = jnp.sum(x, axis=-1, keepdims=True) * (1.0 / d_real)
    diff = x - mean
    var = jnp.sum(diff * diff, axis=-1, keepdims=True) * (1.0 / (d_real - 1.0))
    std = jnp.sqrt(var)
    # Exact divide by default (correctness at f32 tolerances); approx=True moves
    # the reciprocal to the EUP slot when the caller can afford ~1e-3 rel error.
    inv = pl.reciprocal(std + EPS, approx=approx_recip)

    # gamma/beta are folded into w_ref / b_ref by the wrapper.
    z = diff * inv                                          # (TM, D)

    # ----- Sublayer: Linear(D, D) on the MXU (f32 accumulation) -----
    y = jnp.dot(z.astype(w_ref.dtype), w_ref[...],
                preferred_element_type=jnp.float32) + b_ref[...]

    # ----- Dropout (eval mode => identity) + residual add -----
    o_ref[...] = (x + y).astype(o_ref.dtype)


def sublayer_connection(x, gamma, beta, w, b, *, tm=512,
                        matmul_dtype=jnp.float32, approx_recip=False):
    """x: (B, S, D) f32. gamma/beta/b: (D,). w: (D, D)."""
    B, S, D = x.shape
    assert D > 1, "LayerNorm with unbiased std needs at least 2 features"
    M = B * S
    x2 = x.reshape(M, D)

    # Fold LayerNorm affine into the Linear (valid: dropout is identity).
    w_f = (gamma.reshape(D, 1) * w).astype(matmul_dtype)           # (D, D)
    b_f = (beta.reshape(1, D) @ w + b.reshape(1, D)).astype(jnp.float32)  # (1, D)

    # Row tile: multiple of 8, capped so the row grid has >= 2 steps when
    # possible (v7x has 2 TensorCores; "parallel" shards the row axis).
    TM = min(tm, max(8, _round_up(pl.cdiv(M, 2), 8)))
    Mp = pl.cdiv(M, TM) * TM

    # Row-only padding of the ragged M tail; no feature padding, no full copy.
    needs_row_pad = Mp != M
    x_in = jnp.pad(x2, ((0, Mp - M), (0, 0))) if needs_row_pad else x2

    # Explicit VMEM budget: resident W (single-buffered) + folded bias +
    # double-buffered x/out tiles + temporaries, with headroom.
    w_bytes = D * D * jnp.dtype(matmul_dtype).itemsize
    io_bytes = 2 * (2 * TM * D * 4)                 # x + out tiles, 2 buffers each
    tmp_bytes = 4 * TM * D * 4                      # diff / z / y style temporaries
    bias_bytes = 8 * _round_up(D, 128) * 4
    vmem_limit = int(1.25 * (w_bytes + io_bytes + tmp_bytes + bias_bytes)) + (2 << 20)
    vmem_limit = min(max(vmem_limit, 4 << 20), 64 << 20)

    kernel = functools.partial(sublayer_connection_kernel,
                               d_real=float(D), approx_recip=bool(approx_recip))

    out = pl.pallas_call(
        kernel,
        out_shape=jax.ShapeDtypeStruct((Mp, D), x.dtype),
        grid_spec=pltpu.PrefetchScalarGridSpec(
            num_scalar_prefetch=0,
            grid=(Mp // TM,),
            in_specs=[
                pl.BlockSpec((TM, D), lambda i: (i, 0)),   # x tile (full-D last dim)
                _const_block_spec((D, D)),                 # folded W, resident, 1-buf
                _const_block_spec((1, D)),                 # folded bias, 1-buf
            ],
            out_specs=pl.BlockSpec((TM, D), lambda i: (i, 0)),
        ),
        compiler_params=pltpu.CompilerParams(
            dimension_semantics=("parallel",),
            vmem_limit_bytes=vmem_limit),
    )(x_in, w_f, b_f)

    if needs_row_pad:
        out = out[:M]
    out = out.reshape(B, S, D)

    # Seq-length trimming glue from the PyTorch forward is a no-op here: the
    # Linear sublayer preserves the sequence length.
    return out


def reference(x, gamma, beta, w, b):
    mean = jnp.mean(x, axis=-1, keepdims=True)
    diff = x - mean
    var = jnp.sum(diff * diff, axis=-1, keepdims=True) / (x.shape[-1] - 1)
    std = jnp.sqrt(var)
    normed = gamma * diff / (std + EPS) + beta
    sub = normed @ w + b
    return x + sub


if __name__ == "__main__":
    B, S, D = 2, 8, 32  # size = D = 32 features

    key = jax.random.PRNGKey(0)
    kx, kw, kb = jax.random.split(key, 3)

    x = jax.random.normal(kx, (B, S, D), dtype=jnp.float32)

    # LayerNorm params per module __init__: a_2 = ones(features), b_2 = zeros(features)
    gamma = jnp.ones((D,), dtype=jnp.float32)
    beta = jnp.zeros((D,), dtype=jnp.float32)

    # Deterministic synthetic sublayer: Linear(D, D)
    w = jax.random.normal(kw, (D, D), dtype=jnp.float32) * (1.0 / jnp.sqrt(D))
    b = jax.random.normal(kb, (D,), dtype=jnp.float32) * 0.01

    ref = reference(x, gamma, beta, w, b)

    # f32 MXU operands + exact reciprocal: tight tolerance check.
    out_f32 = jax.block_until_ready(
        sublayer_connection(x, gamma, beta, w, b, matmul_dtype=jnp.float32))
    assert out_f32.shape == (B, S, D)
    assert jnp.allclose(out_f32, ref, atol=1e-4, rtol=1e-4), \
        f"f32 max abs diff {jnp.max(jnp.abs(out_f32 - ref))}"

    # bf16 MXU operands (v6e/v7x-native path): relaxed tolerance.
    out_bf16 = jax.block_until_ready(
        sublayer_connection(x, gamma, beta, w, b, matmul_dtype=jnp.bfloat16))
    assert jnp.allclose(out_bf16, ref, atol=3e-2, rtol=3e-2), \
        f"bf16 max abs diff {jnp.max(jnp.abs(out_bf16 - ref))}"

    print("KERNEL_OK")
</pallas_src>

<mosaic_0001>
module attributes {stable_mosaic.version = 11 : i64} {
  func.func @sublayer_connection_kernel(%arg0: i32, %arg1: memref<8x32xf32, #tpu.memory_space<vmem>>, %arg2: memref<32x32xf32, #tpu.memory_space<vmem>>, %arg3: memref<1x32xf32, #tpu.memory_space<vmem>>, %arg4: memref<8x32xf32, #tpu.memory_space<vmem>>) attributes {dimension_semantics = [#tpu.dimension_semantics<parallel>], iteration_bounds = array<i64: 2>, scalar_prefetch = 0 : i64, scratch_operands = 0 : i64, tpu.core_type = #tpu.core_type<tc>, window_params = [{transform_indices = @transform_0, window_bounds = array<i64: 8, 32>}, {pipeline_mode = #tpu.pipeline_mode<synchronous>, transform_indices = @transform_1, window_bounds = array<i64: 32, 32>}, {pipeline_mode = #tpu.pipeline_mode<synchronous>, transform_indices = @transform_2, window_bounds = array<i64: 1, 32>}, {transform_indices = @transform_3, window_bounds = array<i64: 8, 32>}]} {
    %c0 = arith.constant 0 : index
    %c0_0 = arith.constant 0 : index
    %0 = vector.load %arg1[%c0, %c0_0] : memref<8x32xf32, #tpu.memory_space<vmem>>, vector<8x32xf32>
    %cst = arith.constant dense<0.000000e+00> : vector<8xf32>
    %1 = vector.multi_reduction <add>, %0, %cst [1] : vector<8x32xf32> to vector<8xf32>
    %2 = vector.shape_cast %1 : vector<8xf32> to vector<8x1xf32>
    %cst_1 = arith.constant 3.125000e-02 : f32
    %3 = vector.broadcast %cst_1 : f32 to vector<8x1xf32>
    %4 = arith.mulf %2, %3 : vector<8x1xf32>
    %5 = vector.broadcast %4 : vector<8x1xf32> to vector<8x32xf32>
    %6 = arith.subf %0, %5 : vector<8x32xf32>
    %7 = arith.mulf %6, %6 : vector<8x32xf32>
    %cst_2 = arith.constant dense<0.000000e+00> : vector<8xf32>
    %8 = vector.multi_reduction <add>, %7, %cst_2 [1] : vector<8x32xf32> to vector<8xf32>
    %9 = vector.shape_cast %8 : vector<8xf32> to vector<8x1xf32>
    %cst_3 = arith.constant 0.0322580636 : f32
    %10 = vector.broadcast %cst_3 : f32 to vector<8x1xf32>
    %11 = arith.mulf %9, %10 : vector<8x1xf32>
    %12 = math.sqrt %11 : vector<8x1xf32>
    %cst_4 = arith.constant 9.99999997E-7 : f32
    %13 = vector.broadcast %cst_4 : f32 to vector<8x1xf32>
    %14 = arith.addf %12, %13 : vector<8x1xf32>
    %15 = tpu.reciprocal %14 : vector<8x1xf32> -> vector<8x1xf32>
    %16 = vector.broadcast %15 : vector<8x1xf32> to vector<8x32xf32>
    %17 = arith.mulf %6, %16 : vector<8x32xf32>
    %c0_5 = arith.constant 0 : index
    %c0_6 = arith.constant 0 : index
    %18 = vector.load %arg2[%c0_5, %c0_6] : memref<32x32xf32, #tpu.memory_space<vmem>>, vector<32x32xf32>
    %cst_7 = arith.constant dense<0.000000e+00> : vector<8x32xf32>
    %19 = tpu.matmul %17, %18, %cst_7 {dimension_numbers = #tpu.dot_dimension_numbers<[1], [0], [0], [1], [0, 0, 1, 1], [], []>} : vector<8x32xf32>, vector<32x32xf32>, vector<8x32xf32> -> vector<8x32xf32>
    %c0_8 = arith.constant 0 : index
    %c0_9 = arith.constant 0 : index
    %20 = vector.load %arg3[%c0_8, %c0_9] : memref<1x32xf32, #tpu.memory_space<vmem>>, vector<1x32xf32>
    %21 = vector.broadcast %20 : vector<1x32xf32> to vector<8x32xf32>
    %22 = arith.addf %19, %21 : vector<8x32xf32>
    %23 = arith.addf %0, %22 : vector<8x32xf32>
    %c0_10 = arith.constant 0 : index
    %c0_11 = arith.constant 0 : index
    %24 = vector.load %arg4[%c0_10, %c0_11] : memref<8x32xf32, #tpu.memory_space<vmem>>, vector<8x32xf32>
    tpu.vector_store %arg4[%c0_10, %c0_11], %23 {strides = array<i32>} : memref<8x32xf32, #tpu.memory_space<vmem>>, vector<8x32xf32>,
    return
  }
  func.func @transform_0(%arg0: i32) -> (i32, i32) {
    %c0_i32 = arith.constant 0 : i32
    %c0_i32_0 = arith.constant 0 : i32
    return %arg0, %c0_i32 : i32, i32
  }
  func.func @transform_1(%arg0: i32) -> (i32, i32) {
    %c0_i32 = arith.constant 0 : i32
    %c0_i32_0 = arith.constant 0 : i32
    %c0_i32_1 = arith.constant 0 : i32
    return %c0_i32, %c0_i32_0 : i32, i32
  }
  func.func @transform_2(%arg0: i32) -> (i32, i32) {
    %c0_i32 = arith.constant 0 : i32
    %c0_i32_0 = arith.constant 0 : i32
    %c0_i32_1 = arith.constant 0 : i32
    return %c0_i32, %c0_i32_0 : i32, i32
  }
  func.func @transform_3(%arg0: i32) -> (i32, i32) {
    %c0_i32 = arith.constant 0 : i32
    %c0_i32_0 = arith.constant 0 : i32
    return %arg0, %c0_i32 : i32, i32
  }
}

</mosaic_0001>

<llo_original>
// kernel: tpu_custom_call.1
$region0: #{tpu_custom_call.1}
  #allocation0 [shape = 'u32[]', space=smem, size = 0x4, offset = 0x4, fixed_abs, tag = 'smem constant byte address 0x4 - core index']
  #allocation1 [shape = 'u32[144,128]{1,0:T(1,128)}', space=vmem, size = 0x12000, scoped, tag = 'internal scratch']
  %s0 = inlined_call_operand.hbm [shape: f32[16,32], index: 0, kind: input, shape index: {}]
  %s1 = inlined_call_operand.hbm [shape: f32[32,32], index: 1, kind: input, shape index: {}]
  %s2 = inlined_call_operand.vmem [shape: f32[1,32], index: 2, kind: input, shape index: {}]
  %s3 = inlined_call_operand.hbm [shape: f32[16,32], index: 3, kind: output, shape index: {}]
  %s4 = sld [smem:[#allocation0]]
  $region53: #{tpu_custom_call.1} parent=0
    _
  %s6 = ssub.s32 1, %s4
  %s7 = scalar_select 0, %s6, %s4
  $region1: #{tpu_custom_call.1} parent=0
    #allocation2 [shape = 'u8[8192]{0}', space=vmem, size = 0x2000, scoped, tag = 'input window, operand 0']
    #allocation3 [shape = 's32[2]{0}', space=sflag, size = 0x8, scoped, tag = 'scoped memory for tpu_custom_call.1']
    #allocation4 [shape = 's32[2]{0}', space=sflag, size = 0x8, scoped, tag = 'scoped memory for tpu_custom_call.1']
    #allocation5 [shape = 'u8[16384]{0}', space=vmem, size = 0x4000, scoped, tag = 'input window, operand 1, single buffered']
    #allocation6 [shape = 's32[1]{0}', space=sflag, size = 0x4, scoped, tag = 'scoped memory for tpu_custom_call.1']
    #allocation7 [shape = 'u8[8192]{0}', space=vmem, size = 0x2000, scoped, tag = 'output window, operand 0']
    %8 = vsyncpa [#allocation3], 0
    %s9 = scalar_lea.sflag [#allocation3], 1
    %10 = vsyncpa %s9, 0
    %11 = vsyncpa [#allocation6], 0
    %12 = vsyncpa [#allocation4], 0
    %s13 = scalar_lea.sflag [#allocation4], 1
    %14 = vsyncpa %s13, 0
    loop: start=0, step=1, limit=4
    $region2: #{tpu_custom_call.1} parent=1 // loop_pre_header
      _
    $region3: #{tpu_custom_call.1} parent=1 // loop_header
      %s16 = sphi 0, %s20
      %p17 = scmp.ge.s32.totalorder %s16, 4
      %s26 = sphi 0, %s28
      %s29 = sphi 0, %s26
      %s30 = sphi 0, %s29
      %s46 = sphi 0, %s30
      %s50 = sphi 0, %s50
      %s52 = sphi 0, %s50
      %s53 = sphi 0, %s52
      %s67 = sphi 0, %s53
      %s71 = sphi 0, %s71
      %s73 = sphi 0, %s71
      %s74 = sphi 0, %s73
      %s88 = sphi 0, %s74
      %s94 = sphi 0, %s96
      %s97 = sphi 0, %s94
      %s98 = sphi 0, %s97
      %s114 = sphi 0, %s98
    $region4: #{tpu_custom_call.1} parent=1 // loop_header_branch
      %19 = sbr.rel (%p17) target = $region8
    $region5: #{tpu_custom_call.1} parent=1 // loop_body
      %s21 = ssub.s32 %s16, 1
      %s22 = ssub.s32 %s16, 2
      %s23 = sadd.s32 %s16, 1
      %s24 = ssub.s32 %s16, %s23
      %p25 = scmp.eq.s32.totalorder %s24, 0
      %s27 = sadd.s32 %s26, 1
      %s28 = scalar_select %p25, %s26, %s27
      %p31 = pneg %p25
      %p32 = scmp.eq.s32.totalorder %s16, 1
      %p33 = por %p31, %p32
      %p34 = scmp.ne.s32.totalorder %s26, %s29
      %p35 = scmp.eq.s32.totalorder %s16, 0
      %p36 = por %p34, %p35
      %p37 = scmp.ne.s32.totalorder %s26, %s29
      %p38 = scmp.eq.s32.totalorder %s21, 1
      %p39 = por %p37, %p38
      %p40 = scmp.ne.s32.totalorder %s29, %s30
      %p41 = scmp.eq.s32.totalorder %s21, 0
      %p42 = por %p40, %p41
      %p43 = scmp.ne.s32.totalorder %s29, %s30
      %p44 = scmp.eq.s32.totalorder %s22, 1
      %p45 = por %p43, %p44
      %p47 = scmp.ne.s32.totalorder %s30, %s46
      %p48 = scmp.eq.s32.totalorder %s22, 0
      %p49 = por %p47, %p48
      %s51 = sadd.s32 %s50, 1
      %p54 = scmp.eq.s32.totalorder %s16, 1
      %p55 = scmp.ne.s32.totalorder %s50, %s52
      %p56 = scmp.eq.s32.totalorder %s16, 0
      %p57 = por %p55, %p56
      %p58 = scmp.ne.s32.totalorder %s50, %s52
      %p59 = scmp.eq.s32.totalorder %s21, 1
      %p60 = por %p58, %p59
      %p61 = scmp.ne.s32.totalorder %s52, %s53
      %p62 = scmp.eq.s32.totalorder %s21, 0
      %p63 = por %p61, %p62
      %p64 = scmp.ne.s32.totalorder %s52, %s53
      %p65 = scmp.eq.s32.totalorder %s22, 1
      %p66 = por %p64, %p65
      %p68 = scmp.ne.s32.totalorder %s53, %s67
      %p69 = scmp.eq.s32.totalorder %s22, 0
      %p70 = por %p68, %p69
      %s72 = sadd.s32 %s71, 1
      %p75 = scmp.eq.s32.totalorder %s16, 1
      %p76 = scmp.ne.s32.totalorder %s71, %s73
      %p77 = scmp.eq.s32.totalorder %s16, 0
      %p78 = por %p76, %p77
      %p79 = scmp.ne.s32.totalorder %s71, %s73
      %p80 = scmp.eq.s32.totalorder %s21, 1
      %p81 = por %p79, %p80
      %p82 = scmp.ne.s32.totalorder %s73, %s74
      %p83 = scmp.eq.s32.totalorder %s21, 0
      %p84 = por %p82, %p83
      %p85 = scmp.ne.s32.totalorder %s73, %s74
      %p86 = scmp.eq.s32.totalorder %s22, 1
      %p87 = por %p85, %p86
      %p89 = scmp.ne.s32.totalorder %s74, %s88
      %p90 = scmp.eq.s32.totalorder %s22, 0
      %p91 = por %p89, %p90
      %s92 = ssub.s32 %s16, %s23
      %p93 = scmp.eq.s32.totalorder %s92, 0
      %s95 = sadd.s32 %s94, 1
      %s96 = scalar_select %p93, %s94, %s95
      %p99 = pneg %p93
      %p100 = scmp.eq.s32.totalorder %s16, 1
      %p101 = por %p99, %p100
      %p102 = scmp.ne.s32.totalorder %s94, %s97
      %p103 = scmp.eq.s32.totalorder %s16, 0
      %p104 = por %p102, %p103
      %p105 = scmp.ne.s32.totalorder %s94, %s97
      %p106 = scmp.eq.s32.totalorder %s21, 1
      %p107 = por %p105, %p106
      %p108 = scmp.ne.s32.totalorder %s97, %s98
      %p109 = scmp.eq.s32.totalorder %s21, 0
      %p110 = por %p108, %p109
      %p111 = scmp.ne.s32.totalorder %s97, %s98
      %p112 = scmp.eq.s32.totalorder %s22, 1
      %p113 = por %p111, %p112
      %p115 = scmp.ne.s32.totalorder %s98, %s114
      %p116 = scmp.eq.s32.totalorder %s22, 0
      %p117 = por %p115, %p116
      %p118 = scmp.le.s32.totalorder 1, %s16
      %p119 = scmp.lt.s32.totalorder %s16, 3
      %p120 = pnand %p118, %p119
      %p121 = pneg %p120
      // Predicated region
      $region9: #{tpu_custom_call.1} parent=5 // pred_check
        _
      $region10: #{tpu_custom_call.1} parent=5 // pred_check_branch
        %123 = sbr.rel (%p120) target = $region12
      $region11: #{tpu_custom_call.1} parent=5 // pred_region
        %s124 = ssub.s32 %s16, 1
        // Predicated region
        $region13: #{tpu_custom_call.1} parent=11 // pred_check
          %p125 = pneg %p63
        $region14: #{tpu_custom_call.1} parent=11 // pred_check_branch
          %127 = sbr.rel (%p125) target = $region16
        $region15: #{tpu_custom_call.1} parent=11 // pred_region
          %s129 = ssub.s32 512, 512
          %130 = vsyncadd [#allocation6], %s129
          %s131 = sshll.u32 [#allocation5], 4
          %s132 = int_to_ptr.vmem [resolvable:$true] %s131
          %137 = dma.hbm_to_vmem [thread:$0]  %s1, 512, %s132, [#allocation6], 128, 128, 8
        $region16: #{tpu_custom_call.1} parent=11 // pred_fallthru
          _
        // Predicated region
        $region17: #{tpu_custom_call.1} parent=11 // pred_check
          %p138 = pneg %p84
        $region18: #{tpu_custom_call.1} parent=11 // pred_check_branch
          %140 = sbr.rel (%p138) target = $region20
        $region19: #{tpu_custom_call.1} parent=11 // pred_region
          _
        $region20: #{tpu_custom_call.1} parent=11 // pred_fallthru
          _
      $region12: #{tpu_custom_call.1} parent=5 // pred_fallthru
        _
      %p141 = scmp.lt.s32.totalorder %s16, 2
      // Predicated region
      $region21: #{tpu_custom_call.1} parent=5 // pred_check
        %p142 = pneg %p141
      $region22: #{tpu_custom_call.1} parent=5 // pred_check_branch
        %144 = sbr.rel (%p142) target = $region24
      $region23: #{tpu_custom_call.1} parent=5 // pred_region
        // Predicated region
        $region25: #{tpu_custom_call.1} parent=23 // pred_check
          %p145 = pneg %p36
        $region26: #{tpu_custom_call.1} parent=23 // pred_check_branch
          %147 = sbr.rel (%p145) target = $region28
        $region27: #{tpu_custom_call.1} parent=23 // pred_region
          %s148 = sand.u32 %s26, 1
          %s149 = scalar_lea.sflag [#allocation3], %s148
          %s150 = sand.u32 %s26, 1
          %s151 = smul.addr %s150, 8
          %s152 = scalar_lea.vmem [#allocation2], %s151
          %s154 = ssub.s32 128, 128
          %155 = vsyncadd %s149, %s154
          %s156 = smul.addr %s16, 128
          %s157 = scalar_lea.hbm %s0, %s156
          %s159 = sshll.u32 %s152, 4
          %s160 = int_to_ptr.vmem [resolvable:$true] %s159
          %162 = dma.hbm_to_vmem [thread:$0]  %s157, 128, %s160, %s149
        $region28: #{tpu_custom_call.1} parent=23 // pred_fallthru
          _
      $region24: #{tpu_custom_call.1} parent=5 // pred_fallthru
        _
      %p163 = scmp.le.s32.totalorder 1, %s16
      %p164 = scmp.lt.s32.totalorder %s16, 3
      %p165 = pnand %p163, %p164
      %p166 = pneg %p165
      // Predicated region
      $region29: #{tpu_custom_call.1} parent=5 // pred_check
        _
      $region30: #{tpu_custom_call.1} parent=5 // pred_check_branch
        %168 = sbr.rel (%p165) target = $region32
      $region31: #{tpu_custom_call.1} parent=5 // pred_region
        %s169 = ssub.s32 %s16, 1
        %s170 = sand.u32 %s29, 1
        %s171 = scalar_lea.sflag [#allocation3], %s170
        %s172 = sand.u32 %s29, 1
        %s173 = smul.addr %s172, 8
        %s174 = scalar_lea.vmem [#allocation2], %s173
        // Predicated region
        $region33: #{tpu_custom_call.1} parent=31 // pred_check
          %p175 = pneg %p42
        $region34: #{tpu_custom_call.1} parent=31 // pred_check_branch
          %177 = sbr.rel (%p175) target = $region36
        $region35: #{tpu_custom_call.1} parent=31 // pred_region
          %178 = dma.done %s171, 128
        $region36: #{tpu_custom_call.1} parent=31 // pred_fallthru
          _
        // Predicated region
        $region37: #{tpu_custom_call.1} parent=31 // pred_check
          %p179 = pneg %p63
        $region38: #{tpu_custom_call.1} parent=31 // pred_check_branch
          %181 = sbr.rel (%p179) target = $region40
        $region39: #{tpu_custom_call.1} parent=31 // pred_region
          %182 = dma.done [#allocation6], 512
        $region40: #{tpu_custom_call.1} parent=31 // pred_fallthru
          _
        %s183 = sand.u32 %s29, 1
        %s184 = scalar_lea.sflag [#allocation3], %s183
        %s185 = sand.u32 %s29, 1
        %s186 = smul.addr %s185, 8
        %s187 = scalar_lea.vmem [#allocation2], %s186
        %p188 = pneg %p42
        %p189 = pneg %p39
        %p190 = pneg %p63
        %p191 = pneg %p60
        %p192 = pneg %p84
        %p193 = pneg %p81
        %p194 = pneg %p110
        %p195 = pneg %p107
        %s196 = sand.u32 %s97, 1
        %s197 = scalar_lea.sflag [#allocation4], %s196
        %s198 = sand.u32 %s97, 1
        %s199 = smul.addr %s198, 8
        %s200 = scalar_lea.vmem [#allocation7], %s199
        %v201 = vld [vmem:[%s174] sm:$0xff]
        %vm202 = vcmask 261120
        %v203 = vsel %vm202, %v201, 0.0
        %204 = vadd.xlane.f32.xlu0 %v203
        %v205 = vpop.xlane.xlu0 %204
        %v206 = vmul.f32 %v205, 0.03125
        %v207 = vsub.f32 %v201, %v206
        %v208 = vmul.f32 %v207, %v207
        %v209 = vsel %vm202, %v208, 0.0
        %210 = vadd.xlane.f32.xlu0 %v209
        %v211 = vpop.xlane.xlu0 %210
        %v212 = vmul.f32 %v211, 0.032258064
        %v213 = vrsqrt.pop %v212
        %v214 = vmul.f32 %v212, %v213
        %vm215 = vcmp.eq.f32.partialorder %v212, inf
        %v216 = vsel %vm215, %v212, %v214
        %vm217 = vcmp.eq.f32.partialorder %v212, 0.0
        %v218 = vand.u32 %v212, 2147483648
        %v219 = vsel %vm217, %v218, %v216
        %v220 = vadd.f32 %v219, 1e-06
        %v221 = vrcp.pop %v220
        %v222 = vmul.f32 %v207, %v221
        %v223 = vld [vmem:[#allocation5] sm:$0xff]
        %v224 = vld [vmem:[#allocation5 + $0x8] sm:$0xff]
        %v225 = vld [vmem:[#allocation5 + $0x10] sm:$0xff]
        %v226 = vld [vmem:[#allocation5 + $0x18] sm:$0xff]
        %v227 = vld [vmem:[%s2] sm:$0x1]
        %v229 = vlaneseq
        %v230 = vshrl.u32 %v229, 7
        %v231 = vsub.s32 0, %v230
        %v232 = vrot.slane %v227, %v231
        %v235 = vsel %vm202, %v222, 0
        %237 = vmatprep.subr.mxu0 0.0
        %238 = vmatpush1.msra.mxu0 %v223
        %239 = vmatprep.subr.mxu0 0.0
        %240 = vmatpush1.msra.mxu0 %v224
        %241 = vmatprep.subr.mxu0 0.0
        %242 = vmatpush1.msra.mxu0 %v225
        %243 = vmatprep.subr.mxu0 0.0
        %244 = vmatpush1.msra.mxu0 %v226
        %245 = vmatprep.subr.mxu0 0.0
        %246 = vmatpush1.msra.mxu0 0.0
        %247 = vmatprep.subr.mxu0 0.0
        %248 = vmatpush1.msra.mxu0 0.0
        %249 = vmatprep.subr.mxu0 0.0
        %250 = vmatpush1.msra.mxu0 0.0
        %251 = vmatprep.subr.mxu0 0.0
        %252 = vmatpush1.msra.mxu0 0.0
        %253 = vmatprep.subr.mxu0 0.0
        %254 = vmatpush1.msra.mxu0 0.0
        %255 = vmatprep.subr.mxu0 0.0
        %256 = vmatpush1.msra.mxu0 0.0
        %257 = vmatprep.subr.mxu0 0.0
        %258 = vmatpush1.msra.mxu0 0.0
        %259 = vmatprep.subr.mxu0 0.0
        %260 = vmatpush1.msra.mxu0 0.0
        %261 = vmatprep.subr.mxu0 0.0
        %262 = vmatpush1.msra.mxu0 0.0
        %263 = vmatprep.subr.mxu0 0.0
        %264 = vmatpush1.msra.mxu0 0.0
        %265 = vmatprep.subr.mxu0 0.0
        %266 = vmatpush1.msra.mxu0 0.0
        %267 = vmatprep.subr.mxu0 0.0
        %268 = vmatpush1.msra.mxu0 0.0
        %269 = vmatprep.subr.mxu0 0.0
        %270 = vmatpush1.msra.mxu0 0.0
        %271 = vmatprep.subr.mxu0 0.0
        %272 = vmatpush1.msra.mxu0 0.0
        %273 = vmatprep.subr.mxu0 0.0
        %274 = vmatpush1.msra.mxu0 0.0
        %275 = vmatprep.subr.mxu0 0.0
        %276 = vmatpush1.msra.mxu0 0.0
        %277 = vmatprep.subr.mxu0 0.0
        %278 = vmatpush1.msra.mxu0 0.0
        %279 = vmatprep.subr.mxu0 0.0
        %280 = vmatpush1.msra.mxu0 0.0
        %281 = vmatprep.subr.mxu0 0.0
        %282 = vmatpush1.msra.mxu0 0.0
        %283 = vmatprep.subr.mxu0 0.0
        %284 = vmatpush1.msra.mxu0 0.0
        %285 = vmatprep.subr.mxu0 0.0
        %286 = vmatpush1.msra.mxu0 0.0
        %287 = vmatprep.subr.mxu0 0.0
        %288 = vmatpush1.msra.mxu0 0.0
        %289 = vmatprep.subr.mxu0 0.0
        %290 = vmatpush1.msra.mxu0 0.0
        %291 = vmatprep.subr.mxu0 0.0
        %292 = vmatpush1.msra.mxu0 0.0
        %293 = vmatprep.subr.mxu0 0.0
        %294 = vmatpush1.msra.mxu0 0.0
        %295 = vmatprep.subr.mxu0 0.0
        %296 = vmatpush1.msra.mxu0 0.0
        %297 = vmatprep.subr.mxu0 0.0
        %298 = vmatpush1.msra.mxu0 0.0
        %299 = vmatprep.subr.mxu0 0.0
        %300 = vmatpush1.msra.mxu0 0.0
        %301 = vmatprep.mubr.f32.mxu0 0.0
        %302 = vmatmul.mubr.f32.gmra.mrb[0].mxu0 %v235
        %v303 = vpop.f32.mrb[0].mxu0
        %v304 = vadd.f32 %v232, %v303
        %v305 = vpop.f32.mrb[0].mxu0
        %306 = vdwg.mxu0
        %v307 = vadd.f32 %v201, %v304
        %308 = vst.msk [vmem:[%s200] sm:$0xff] %vm202, %v307
        %s309 = sand.u32 %s97, 1
        %s310 = scalar_lea.sflag [#allocation4], %s309
        %s311 = sand.u32 %s97, 1
        %s312 = smul.addr %s311, 8
        %s313 = scalar_lea.vmem [#allocation7], %s312
        // Predicated region
        $region41: #{tpu_custom_call.1} parent=31 // pred_check
          %p314 = pneg %p107
        $region42: #{tpu_custom_call.1} parent=31 // pred_check_branch
          %316 = sbr.rel (%p314) target = $region44
        $region43: #{tpu_custom_call.1} parent=31 // pred_region
          %s318 = ssub.s32 128, 128
          %319 = vsyncadd %s310, %s318
          %s320 = smul.addr %s21, 128
          %s321 = scalar_lea.hbm %s3, %s320
          %s323 = sshll.u32 %s313, 4
          %s324 = int_to_ptr.vmem [resolvable:$true] %s323
          %326 = dma.vmem_to_hbm [thread:$0]  %s324, 128, %s321, %s310
        $region44: #{tpu_custom_call.1} parent=31 // pred_fallthru
          _
      $region32: #{tpu_custom_call.1} parent=5 // pred_fallthru
        _
      %p327 = scmp.le.s32.totalorder 2, %s16
      // Predicated region
      $region45: #{tpu_custom_call.1} parent=5 // pred_check
        %p328 = pneg %p327
      $region46: #{tpu_custom_call.1} parent=5 // pred_check_branch
        %330 = sbr.rel (%p328) target = $region48
      $region47: #{tpu_custom_call.1} parent=5 // pred_region
        %s331 = ssub.s32 %s16, 2
        // Predicated region
        $region49: #{tpu_custom_call.1} parent=47 // pred_check
          %p332 = pneg %p113
        $region50: #{tpu_custom_call.1} parent=47 // pred_check_branch
          %334 = sbr.rel (%p332) target = $region52
        $region51: #{tpu_custom_call.1} parent=47 // pred_region
          %s335 = sand.u32 %s98, 1
          %s336 = scalar_lea.sflag [#allocation4], %s335
          %s337 = sand.u32 %s98, 1
          %s338 = smul.addr %s337, 8
          %s339 = scalar_lea.vmem [#allocation7], %s338
          %340 = dma.done %s336, 128
        $region52: #{tpu_custom_call.1} parent=47 // pred_fallthru
          _
      $region48: #{tpu_custom_call.1} parent=5 // pred_fallthru
        _
    $region6: #{tpu_custom_call.1} parent=1 // loop_footer
      %s20 = sadd.s32 1, %s16
    $region7: #{tpu_custom_call.1} parent=1 // loop_footer_branch
      %15 = sbr.rel target = $region3
    $region8: #{tpu_custom_call.1} parent=1 // loop_exit
      _
    %341 = vsyncpa [#allocation3], 1
    %s342 = scalar_lea.sflag [#allocation3], 1
    %343 = vsyncpa %s342, 1
    %344 = vsyncpa [#allocation6], 1
    %345 = vsyncpa [#allocation4], 1
    %s346 = scalar_lea.sflag [#allocation4], 1
    %347 = vsyncpa %s346, 1

</llo_original>
